<compile_context>
chip_gen: v5e
topology: v5e:2x2
jax: 0.10.0
libtpu: 0.0.40
codegen_flags: <defaults>
</compile_context>

<pallas_src>
import functools

import jax
import jax.numpy as jnp
from jax.experimental import pallas as pl
from jax.experimental.pallas import tpu as pltpu

IN_DIM = 30 * 30      # 900
IN_PAD = 1024         # 900 zero-padded to a clean multiple of the MXU depth
H1 = 256
H2 = 64
_LANE = 128


def _round_up(x, m):
    return (x + m - 1) // m * m


def _cdiv(a, b):
    return (a + b - 1) // b


def _mlp_kernel(x_ref, w1_ref, b1_ref, w2_ref, b2_ref, w3_ref, b3_ref, o_ref):
    # x_ref: (bm, IN_PAD) bf16; weights bf16 (VMEM-resident); biases f32.
    # All matmuls accumulate in f32 on the MXU; elementwise math stays f32.
    h1 = jnp.dot(x_ref[...], w1_ref[...], preferred_element_type=jnp.float32)
    h1 = jnp.maximum(h1 + b1_ref[...], 0.0)
    h2 = jnp.dot(h1.astype(jnp.bfloat16), w2_ref[...],
                 preferred_element_type=jnp.float32)
    h2 = jnp.maximum(h2 + b2_ref[...], 0.0)
    out = jnp.dot(h2.astype(jnp.bfloat16), w3_ref[...],
                  preferred_element_type=jnp.float32)
    o_ref[...] = (out + b3_ref[...]).astype(o_ref.dtype)


@functools.partial(jax.jit, static_argnames=("block_m",))
def att_feat_extractor_forward(x, params, block_m=512):
    """x: (B, 30, 30) or (B, 900) float32. Returns (B, feat) float32."""
    w1, b1, w2, b2, w3, b3 = params
    B = x.shape[0]
    feat = w3.shape[1]
    feat_pad = _round_up(feat, _LANE)

    x2 = x.reshape(B, -1).astype(jnp.float32)       # view(batch, -1)
    assert x2.shape[1] == IN_DIM

    # Batch tile: as large as block_m allows, never larger than the (rounded) batch.
    bm = min(block_m, _round_up(B, 8))
    # Prefer >= 2 grid steps so the "parallel" batch axis can shard across the
    # two TensorCores on v7x (no-op / harmless on v5e & v6e).
    if B > 8 and _cdiv(B, bm) < 2:
        bm = max(8, _round_up(_cdiv(B, 2), 8))
    B_pad = _round_up(B, bm)
    grid = (B_pad // bm,)
    # NOTE: at block_m >= ~2048 raise vmem_limit_bytes (v5e default scoped VMEM is
    # 16 MiB); the default 512 tile uses only a few MiB in bf16.

    # Zero-padded, bf16-cast operands (padding contributes exact zeros).
    x_p = jnp.zeros((B_pad, IN_PAD), jnp.bfloat16).at[:B, :IN_DIM].set(
        x2.astype(jnp.bfloat16))
    w1_p = jnp.zeros((IN_PAD, H1), jnp.bfloat16).at[:IN_DIM, :].set(
        w1.astype(jnp.bfloat16))
    w2_b = w2.astype(jnp.bfloat16)
    w3_p = jnp.zeros((H2, feat_pad), jnp.bfloat16).at[:, :feat].set(
        w3.astype(jnp.bfloat16))
    b1_f = b1.reshape(1, H1).astype(jnp.float32)
    b2_f = b2.reshape(1, H2).astype(jnp.float32)
    b3_p = jnp.zeros((1, feat_pad), jnp.float32).at[:, :feat].set(
        b3.reshape(1, feat).astype(jnp.float32))

    flops = 2 * B_pad * (IN_PAD * H1 + H1 * H2 + H2 * feat_pad)
    bytes_accessed = (
        x_p.size * 2 + w1_p.size * 2 + w2_b.size * 2 + w3_p.size * 2
        + (b1_f.size + b2_f.size + b3_p.size) * 4
        + B_pad * feat_pad * 4)

    out = pl.pallas_call(
        _mlp_kernel,
        out_shape=jax.ShapeDtypeStruct((B_pad, feat_pad), jnp.float32),
        grid_spec=pltpu.PrefetchScalarGridSpec(
            num_scalar_prefetch=0,
            grid=grid,
            in_specs=[
                pl.BlockSpec((bm, IN_PAD), lambda i: (i, 0)),      # x tile
                pl.BlockSpec((IN_PAD, H1), lambda i: (0, 0)),      # W1 (resident)
                pl.BlockSpec((1, H1), lambda i: (0, 0)),           # b1
                pl.BlockSpec((H1, H2), lambda i: (0, 0)),          # W2
                pl.BlockSpec((1, H2), lambda i: (0, 0)),           # b2
                pl.BlockSpec((H2, feat_pad), lambda i: (0, 0)),    # W3 (feat padded)
                pl.BlockSpec((1, feat_pad), lambda i: (0, 0)),     # b3
            ],
            out_specs=pl.BlockSpec((bm, feat_pad), lambda i: (i, 0)),
        ),
        compiler_params=pltpu.CompilerParams(
            dimension_semantics=("parallel",),
        ),
        cost_estimate=pl.CostEstimate(
            flops=flops, transcendentals=0, bytes_accessed=bytes_accessed),
    )(x_p, w1_p, b1_f, w2_b, b2_f, w3_p, b3_p)

    return out[:B, :feat]


def init_params(key, feat):
    """Deterministic init mimicking torch.nn.Linear default (U[-1/sqrt(fan_in), +1/sqrt(fan_in)])."""
    ks = jax.random.split(key, 6)

    def linear(kw, kb, fan_in, fan_out):
        bound = 1.0 / (fan_in ** 0.5)
        w = jax.random.uniform(kw, (fan_in, fan_out), jnp.float32, -bound, bound)
        b = jax.random.uniform(kb, (1, fan_out), jnp.float32, -bound, bound)
        return w, b

    w1, b1 = linear(ks[0], ks[1], IN_DIM, H1)
    w2, b2 = linear(ks[2], ks[3], H1, H2)
    w3, b3 = linear(ks[4], ks[5], H2, feat)
    return (w1, b1, w2, b2, w3, b3)


def reference_forward(x, params):
    w1, b1, w2, b2, w3, b3 = params
    h = x.reshape(x.shape[0], -1)
    h = jnp.maximum(h @ w1 + b1, 0.0)
    h = jnp.maximum(h @ w2 + b2, 0.0)
    return h @ w3 + b3


if __name__ == "__main__":
    key = jax.random.PRNGKey(0)
    k_x, k_p = jax.random.split(key)

    feat = 16
    B = 12    # not a multiple of 8: exercises batch padding and the 2-step grid path
    x = jax.random.normal(k_x, (B, 30, 30), dtype=jnp.float32)
    params = init_params(k_p, feat)

    out = att_feat_extractor_forward(x, params)
    out = jax.block_until_ready(out)

    ref = reference_forward(x, params)
    assert out.shape == (B, feat)
    max_err = float(jnp.max(jnp.abs(out - ref)))
    # bf16 matmul operands (f32 accumulation) -> relaxed tolerance vs f32 reference.
    assert jnp.allclose(out, ref, atol=5e-2, rtol=5e-2), (
        f"mismatch vs pure-JAX reference (max abs err {max_err:.4e})")

    print("KERNEL_OK")
</pallas_src>

<mosaic_0001>
module attributes {stable_mosaic.version = 11 : i64} {
  func.func @_mlp_kernel(%arg0: i32, %arg1: memref<8x1024xbf16, #tpu.memory_space<vmem>>, %arg2: memref<1024x256xbf16, #tpu.memory_space<vmem>>, %arg3: memref<1x256xf32, #tpu.memory_space<vmem>>, %arg4: memref<256x64xbf16, #tpu.memory_space<vmem>>, %arg5: memref<1x64xf32, #tpu.memory_space<vmem>>, %arg6: memref<64x128xbf16, #tpu.memory_space<vmem>>, %arg7: memref<1x128xf32, #tpu.memory_space<vmem>>, %arg8: memref<8x128xf32, #tpu.memory_space<vmem>>) attributes {dimension_semantics = [#tpu.dimension_semantics<parallel>], iteration_bounds = array<i64: 2>, scalar_prefetch = 0 : i64, scratch_operands = 0 : i64, tpu.core_type = #tpu.core_type<tc>, window_params = [{transform_indices = @transform_0, window_bounds = array<i64: 8, 1024>}, {pipeline_mode = #tpu.pipeline_mode<synchronous>, transform_indices = @transform_1, window_bounds = array<i64: 1024, 256>}, {pipeline_mode = #tpu.pipeline_mode<synchronous>, transform_indices = @transform_2, window_bounds = array<i64: 1, 256>}, {pipeline_mode = #tpu.pipeline_mode<synchronous>, transform_indices = @transform_3, window_bounds = array<i64: 256, 64>}, {pipeline_mode = #tpu.pipeline_mode<synchronous>, transform_indices = @transform_4, window_bounds = array<i64: 1, 64>}, {pipeline_mode = #tpu.pipeline_mode<synchronous>, transform_indices = @transform_5, window_bounds = array<i64: 64, 128>}, {pipeline_mode = #tpu.pipeline_mode<synchronous>, transform_indices = @transform_6, window_bounds = array<i64: 1, 128>}, {transform_indices = @transform_7, window_bounds = array<i64: 8, 128>}]} {
    %c0 = arith.constant 0 : index
    %c0_0 = arith.constant 0 : index
    %0 = vector.load %arg1[%c0, %c0_0] : memref<8x1024xbf16, #tpu.memory_space<vmem>>, vector<8x1024xbf16>
    %c0_1 = arith.constant 0 : index
    %c0_2 = arith.constant 0 : index
    %1 = vector.load %arg2[%c0_1, %c0_2] : memref<1024x256xbf16, #tpu.memory_space<vmem>>, vector<1024x256xbf16>
    %cst = arith.constant dense<0.000000e+00> : vector<8x256xf32>
    %2 = tpu.matmul %0, %1, %cst {dimension_numbers = #tpu.dot_dimension_numbers<[1], [0], [0], [1], [0, 0, 1, 1], [], []>} : vector<8x1024xbf16>, vector<1024x256xbf16>, vector<8x256xf32> -> vector<8x256xf32>
    %c0_3 = arith.constant 0 : index
    %c0_4 = arith.constant 0 : index
    %3 = vector.load %arg3[%c0_3, %c0_4] : memref<1x256xf32, #tpu.memory_space<vmem>>, vector<1x256xf32>
    %4 = vector.broadcast %3 : vector<1x256xf32> to vector<8x256xf32>
    %5 = arith.addf %2, %4 : vector<8x256xf32>
    %cst_5 = arith.constant 0.000000e+00 : f32
    %6 = vector.broadcast %cst_5 : f32 to vector<8x256xf32>
    %7 = arith.maximumf %5, %6 : vector<8x256xf32>
    %8 = arith.truncf %7 : vector<8x256xf32> to vector<8x256xbf16>
    %c0_6 = arith.constant 0 : index
    %c0_7 = arith.constant 0 : index
    %9 = vector.load %arg4[%c0_6, %c0_7] : memref<256x64xbf16, #tpu.memory_space<vmem>>, vector<256x64xbf16>
    %cst_8 = arith.constant dense<0.000000e+00> : vector<8x64xf32>
    %10 = tpu.matmul %8, %9, %cst_8 {dimension_numbers = #tpu.dot_dimension_numbers<[1], [0], [0], [1], [0, 0, 1, 1], [], []>} : vector<8x256xbf16>, vector<256x64xbf16>, vector<8x64xf32> -> vector<8x64xf32>
    %c0_9 = arith.constant 0 : index
    %c0_10 = arith.constant 0 : index
    %11 = vector.load %arg5[%c0_9, %c0_10] : memref<1x64xf32, #tpu.memory_space<vmem>>, vector<1x64xf32>
    %12 = vector.broadcast %11 : vector<1x64xf32> to vector<8x64xf32>
    %13 = arith.addf %10, %12 : vector<8x64xf32>
    %cst_11 = arith.constant 0.000000e+00 : f32
    %14 = vector.broadcast %cst_11 : f32 to vector<8x64xf32>
    %15 = arith.maximumf %13, %14 : vector<8x64xf32>
    %16 = arith.truncf %15 : vector<8x64xf32> to vector<8x64xbf16>
    %c0_12 = arith.constant 0 : index
    %c0_13 = arith.constant 0 : index
    %17 = vector.load %arg6[%c0_12, %c0_13] : memref<64x128xbf16, #tpu.memory_space<vmem>>, vector<64x128xbf16>
    %cst_14 = arith.constant dense<0.000000e+00> : vector<8x128xf32>
    %18 = tpu.matmul %16, %17, %cst_14 {dimension_numbers = #tpu.dot_dimension_numbers<[1], [0], [0], [1], [0, 0, 1, 1], [], []>} : vector<8x64xbf16>, vector<64x128xbf16>, vector<8x128xf32> -> vector<8x128xf32>
    %c0_15 = arith.constant 0 : index
    %c0_16 = arith.constant 0 : index
    %19 = vector.load %arg7[%c0_15, %c0_16] : memref<1x128xf32, #tpu.memory_space<vmem>>, vector<1x128xf32>
    %20 = vector.broadcast %19 : vector<1x128xf32> to vector<8x128xf32>
    %21 = arith.addf %18, %20 : vector<8x128xf32>
    %c0_17 = arith.constant 0 : index
    %c0_18 = arith.constant 0 : index
    %22 = vector.load %arg8[%c0_17, %c0_18] : memref<8x128xf32, #tpu.memory_space<vmem>>, vector<8x128xf32>
    tpu.vector_store %arg8[%c0_17, %c0_18], %21 {strides = array<i32>} : memref<8x128xf32, #tpu.memory_space<vmem>>, vector<8x128xf32>,
    return
  }
  func.func @transform_0(%arg0: i32) -> (i32, i32) {
    %c0_i32 = arith.constant 0 : i32
    %c0_i32_0 = arith.constant 0 : i32
    return %arg0, %c0_i32 : i32, i32
  }
  func.func @transform_1(%arg0: i32) -> (i32, i32) {
    %c0_i32 = arith.constant 0 : i32
    %c0_i32_0 = arith.constant 0 : i32
    %c0_i32_1 = arith.constant 0 : i32
    return %c0_i32, %c0_i32_0 : i32, i32
  }
  func.func @transform_2(%arg0: i32) -> (i32, i32) {
    %c0_i32 = arith.constant 0 : i32
    %c0_i32_0 = arith.constant 0 : i32
    %c0_i32_1 = arith.constant 0 : i32
    return %c0_i32, %c0_i32_0 : i32, i32
  }
  func.func @transform_3(%arg0: i32) -> (i32, i32) {
    %c0_i32 = arith.constant 0 : i32
    %c0_i32_0 = arith.constant 0 : i32
    %c0_i32_1 = arith.constant 0 : i32
    return %c0_i32, %c0_i32_0 : i32, i32
  }
  func.func @transform_4(%arg0: i32) -> (i32, i32) {
    %c0_i32 = arith.constant 0 : i32
    %c0_i32_0 = arith.constant 0 : i32
    %c0_i32_1 = arith.constant 0 : i32
    return %c0_i32, %c0_i32_0 : i32, i32
  }
  func.func @transform_5(%arg0: i32) -> (i32, i32) {
    %c0_i32 = arith.constant 0 : i32
    %c0_i32_0 = arith.constant 0 : i32
    %c0_i32_1 = arith.constant 0 : i32
    return %c0_i32, %c0_i32_0 : i32, i32
  }
  func.func @transform_6(%arg0: i32) -> (i32, i32) {
    %c0_i32 = arith.constant 0 : i32
    %c0_i32_0 = arith.constant 0 : i32
    %c0_i32_1 = arith.constant 0 : i32
    return %c0_i32, %c0_i32_0 : i32, i32
  }
  func.func @transform_7(%arg0: i32) -> (i32, i32) {
    %c0_i32 = arith.constant 0 : i32
    %c0_i32_0 = arith.constant 0 : i32
    return %arg0, %c0_i32 : i32, i32
  }
}

</mosaic_0001>

<llo_original>
// kernel: att_feat_extractor_forward.1
$region0: #{att_feat_extractor_forward.1}
  #allocation0 [shape = 'u32[]', space=smem, size = 0x4, offset = 0x4, fixed_abs, tag = 'smem constant byte address 0x4 - core index']
  #allocation1 [shape = 'u32[72,128]{1,0:T(1,128)}', space=vmem, size = 0x9000, scoped, tag = 'internal scratch']
  %s0 = inlined_call_operand.vmem [shape: bf16[16,1024], index: 0, kind: input, shape index: {}]
  %s1 = inlined_call_operand.vmem [shape: bf16[1024,256], index: 1, kind: input, shape index: {}]
  %s2 = inlined_call_operand.vmem [shape: f32[1,256], index: 2, kind: input, shape index: {}]
  %s3 = inlined_call_operand.vmem [shape: bf16[256,64], index: 3, kind: input, shape index: {}]
  %s4 = inlined_call_operand.vmem [shape: f32[1,64], index: 4, kind: input, shape index: {}]
  %s5 = inlined_call_operand.vmem [shape: bf16[64,128], index: 5, kind: input, shape index: {}]
  %s6 = inlined_call_operand.vmem [shape: f32[1,128], index: 6, kind: input, shape index: {}]
  %s7 = inlined_call_operand.hbm [shape: f32[16,128], index: 7, kind: output, shape index: {}]
  %s8 = sld [smem:[#allocation0]]
  $region61: #{att_feat_extractor_forward.1} parent=0
    _
  %s10 = ssub.s32 1, %s8
  %s11 = scalar_select 0, %s10, %s8
  $region1: #{att_feat_extractor_forward.1} parent=0
    #allocation2 [shape = 'u8[8192]{0}', space=vmem, size = 0x2000, scoped, tag = 'output window, operand 0']
    #allocation3 [shape = 's32[2]{0}', space=sflag, size = 0x8, scoped, tag = 'scoped memory for att_feat_extractor_forward.1']
    %12 = vsyncpa [#allocation3], 0
    %s13 = scalar_lea.sflag [#allocation3], 1
    %14 = vsyncpa %s13, 0
    loop: start=0, step=1, limit=4
    $region2: #{att_feat_extractor_forward.1} parent=1 // loop_pre_header
      _
    $region3: #{att_feat_extractor_forward.1} parent=1 // loop_header
      %s16 = sphi 0, %s20
      %p17 = scmp.ge.s32.totalorder %s16, 4
      %s26 = sphi 0, %s28
      %s29 = sphi 0, %s26
      %s30 = sphi 0, %s29
      %s46 = sphi 0, %s30
      %s50 = sphi 0, %s50
      %s52 = sphi 0, %s50
      %s53 = sphi 0, %s52
      %s67 = sphi 0, %s53
      %s71 = sphi 0, %s71
      %s73 = sphi 0, %s71
      %s74 = sphi 0, %s73
      %s88 = sphi 0, %s74
      %s92 = sphi 0, %s92
      %s94 = sphi 0, %s92
      %s95 = sphi 0, %s94
      %s109 = sphi 0, %s95
      %s113 = sphi 0, %s113
      %s115 = sphi 0, %s113
      %s116 = sphi 0, %s115
      %s130 = sphi 0, %s116
      %s134 = sphi 0, %s134
      %s136 = sphi 0, %s134
      %s137 = sphi 0, %s136
      %s151 = sphi 0, %s137
      %s155 = sphi 0, %s155
      %s157 = sphi 0, %s155
      %s158 = sphi 0, %s157
      %s172 = sphi 0, %s158
      %s178 = sphi 0, %s180
      %s181 = sphi 0, %s178
      %s182 = sphi 0, %s181
      %s198 = sphi 0, %s182
    $region4: #{att_feat_extractor_forward.1} parent=1 // loop_header_branch
      %19 = sbr.rel (%p17) target = $region8
    $region5: #{att_feat_extractor_forward.1} parent=1 // loop_body
      %s21 = ssub.s32 %s16, 1
      %s22 = ssub.s32 %s16, 2
      %s23 = sadd.s32 %s16, 1
      %s24 = ssub.s32 %s16, %s23
      %p25 = scmp.eq.s32.totalorder %s24, 0
      %s27 = sadd.s32 %s26, 1
      %s28 = scalar_select %p25, %s26, %s27
      %p31 = pneg %p25
      %p32 = scmp.eq.s32.totalorder %s16, 1
      %p33 = por %p31, %p32
      %p34 = scmp.ne.s32.totalorder %s26, %s29
      %p35 = scmp.eq.s32.totalorder %s16, 0
      %p36 = por %p34, %p35
      %p37 = scmp.ne.s32.totalorder %s26, %s29
      %p38 = scmp.eq.s32.totalorder %s21, 1
      %p39 = por %p37, %p38
      %p40 = scmp.ne.s32.totalorder %s29, %s30
      %p41 = scmp.eq.s32.totalorder %s21, 0
      %p42 = por %p40, %p41
      %p43 = scmp.ne.s32.totalorder %s29, %s30
      %p44 = scmp.eq.s32.totalorder %s22, 1
      %p45 = por %p43, %p44
      %p47 = scmp.ne.s32.totalorder %s30, %s46
      %p48 = scmp.eq.s32.totalorder %s22, 0
      %p49 = por %p47, %p48
      %s51 = sadd.s32 %s50, 1
      %p54 = scmp.eq.s32.totalorder %s16, 1
      %p55 = scmp.ne.s32.totalorder %s50, %s52
      %p56 = scmp.eq.s32.totalorder %s16, 0
      %p57 = por %p55, %p56
      %p58 = scmp.ne.s32.totalorder %s50, %s52
      %p59 = scmp.eq.s32.totalorder %s21, 1
      %p60 = por %p58, %p59
      %p61 = scmp.ne.s32.totalorder %s52, %s53
      %p62 = scmp.eq.s32.totalorder %s21, 0
      %p63 = por %p61, %p62
      %p64 = scmp.ne.s32.totalorder %s52, %s53
      %p65 = scmp.eq.s32.totalorder %s22, 1
      %p66 = por %p64, %p65
      %p68 = scmp.ne.s32.totalorder %s53, %s67
      %p69 = scmp.eq.s32.totalorder %s22, 0
      %p70 = por %p68, %p69
      %s72 = sadd.s32 %s71, 1
      %p75 = scmp.eq.s32.totalorder %s16, 1
      %p76 = scmp.ne.s32.totalorder %s71, %s73
      %p77 = scmp.eq.s32.totalorder %s16, 0
      %p78 = por %p76, %p77
      %p79 = scmp.ne.s32.totalorder %s71, %s73
      %p80 = scmp.eq.s32.totalorder %s21, 1
      %p81 = por %p79, %p80
      %p82 = scmp.ne.s32.totalorder %s73, %s74
      %p83 = scmp.eq.s32.totalorder %s21, 0
      %p84 = por %p82, %p83
      %p85 = scmp.ne.s32.totalorder %s73, %s74
      %p86 = scmp.eq.s32.totalorder %s22, 1
      %p87 = por %p85, %p86
      %p89 = scmp.ne.s32.totalorder %s74, %s88
      %p90 = scmp.eq.s32.totalorder %s22, 0
      %p91 = por %p89, %p90
      %s93 = sadd.s32 %s92, 1
      %p96 = scmp.eq.s32.totalorder %s16, 1
      %p97 = scmp.ne.s32.totalorder %s92, %s94
      %p98 = scmp.eq.s32.totalorder %s16, 0
      %p99 = por %p97, %p98
      %p100 = scmp.ne.s32.totalorder %s92, %s94
      %p101 = scmp.eq.s32.totalorder %s21, 1
      %p102 = por %p100, %p101
      %p103 = scmp.ne.s32.totalorder %s94, %s95
      %p104 = scmp.eq.s32.totalorder %s21, 0
      %p105 = por %p103, %p104
      %p106 = scmp.ne.s32.totalorder %s94, %s95
      %p107 = scmp.eq.s32.totalorder %s22, 1
      %p108 = por %p106, %p107
      %p110 = scmp.ne.s32.totalorder %s95, %s109
      %p111 = scmp.eq.s32.totalorder %s22, 0
      %p112 = por %p110, %p111
      %s114 = sadd.s32 %s113, 1
      %p117 = scmp.eq.s32.totalorder %s16, 1
      %p118 = scmp.ne.s32.totalorder %s113, %s115
      %p119 = scmp.eq.s32.totalorder %s16, 0
      %p120 = por %p118, %p119
      %p121 = scmp.ne.s32.totalorder %s113, %s115
      %p122 = scmp.eq.s32.totalorder %s21, 1
      %p123 = por %p121, %p122
      %p124 = scmp.ne.s32.totalorder %s115, %s116
      %p125 = scmp.eq.s32.totalorder %s21, 0
      %p126 = por %p124, %p125
      %p127 = scmp.ne.s32.totalorder %s115, %s116
      %p128 = scmp.eq.s32.totalorder %s22, 1
      %p129 = por %p127, %p128
      %p131 = scmp.ne.s32.totalorder %s116, %s130
      %p132 = scmp.eq.s32.totalorder %s22, 0
      %p133 = por %p131, %p132
      %s135 = sadd.s32 %s134, 1
      %p138 = scmp.eq.s32.totalorder %s16, 1
      %p139 = scmp.ne.s32.totalorder %s134, %s136
      %p140 = scmp.eq.s32.totalorder %s16, 0
      %p141 = por %p139, %p140
      %p142 = scmp.ne.s32.totalorder %s134, %s136
      %p143 = scmp.eq.s32.totalorder %s21, 1
      %p144 = por %p142, %p143
      %p145 = scmp.ne.s32.totalorder %s136, %s137
      %p146 = scmp.eq.s32.totalorder %s21, 0
      %p147 = por %p145, %p146
      %p148 = scmp.ne.s32.totalorder %s136, %s137
      %p149 = scmp.eq.s32.totalorder %s22, 1
      %p150 = por %p148, %p149
      %p152 = scmp.ne.s32.totalorder %s137, %s151
      %p153 = scmp.eq.s32.totalorder %s22, 0
      %p154 = por %p152, %p153
      %s156 = sadd.s32 %s155, 1
      %p159 = scmp.eq.s32.totalorder %s16, 1
      %p160 = scmp.ne.s32.totalorder %s155, %s157
      %p161 = scmp.eq.s32.totalorder %s16, 0
      %p162 = por %p160, %p161
      %p163 = scmp.ne.s32.totalorder %s155, %s157
      %p164 = scmp.eq.s32.totalorder %s21, 1
      %p165 = por %p163, %p164
      %p166 = scmp.ne.s32.totalorder %s157, %s158
      %p167 = scmp.eq.s32.totalorder %s21, 0
      %p168 = por %p166, %p167
      %p169 = scmp.ne.s32.totalorder %s157, %s158
      %p170 = scmp.eq.s32.totalorder %s22, 1
      %p171 = por %p169, %p170
      %p173 = scmp.ne.s32.totalorder %s158, %s172
      %p174 = scmp.eq.s32.totalorder %s22, 0
      %p175 = por %p173, %p174
      %s176 = ssub.s32 %s16, %s23
      %p177 = scmp.eq.s32.totalorder %s176, 0
      %s179 = sadd.s32 %s178, 1
      %s180 = scalar_select %p177, %s178, %s179
      %p183 = pneg %p177
      %p184 = scmp.eq.s32.totalorder %s16, 1
      %p185 = por %p183, %p184
      %p186 = scmp.ne.s32.totalorder %s178, %s181
      %p187 = scmp.eq.s32.totalorder %s16, 0
      %p188 = por %p186, %p187
      %p189 = scmp.ne.s32.totalorder %s178, %s181
      %p190 = scmp.eq.s32.totalorder %s21, 1
      %p191 = por %p189, %p190
      %p192 = scmp.ne.s32.totalorder %s181, %s182
      %p193 = scmp.eq.s32.totalorder %s21, 0
      %p194 = por %p192, %p193
      %p195 = scmp.ne.s32.totalorder %s181, %s182
      %p196 = scmp.eq.s32.totalorder %s22, 1
      %p197 = por %p195, %p196
      %p199 = scmp.ne.s32.totalorder %s182, %s198
      %p200 = scmp.eq.s32.totalorder %s22, 0
      %p201 = por %p199, %p200
      %p202 = scmp.le.s32.totalorder 1, %s16
      %p203 = scmp.lt.s32.totalorder %s16, 3
      %p204 = pnand %p202, %p203
      %p205 = pneg %p204
      // Predicated region
      $region9: #{att_feat_extractor_forward.1} parent=5 // pred_check
        _
      $region10: #{att_feat_extractor_forward.1} parent=5 // pred_check_branch
        %207 = sbr.rel (%p204) target = $region12
      $region11: #{att_feat_extractor_forward.1} parent=5 // pred_region
        %s208 = ssub.s32 %s16, 1
        // Predicated region
        $region13: #{att_feat_extractor_forward.1} parent=11 // pred_check
          %p209 = pneg %p63
        $region14: #{att_feat_extractor_forward.1} parent=11 // pred_check_branch
          %211 = sbr.rel (%p209) target = $region16
        $region15: #{att_feat_extractor_forward.1} parent=11 // pred_region
          _
        $region16: #{att_feat_extractor_forward.1} parent=11 // pred_fallthru
          _
        // Predicated region
        $region17: #{att_feat_extractor_forward.1} parent=11 // pred_check
          %p212 = pneg %p84
        $region18: #{att_feat_extractor_forward.1} parent=11 // pred_check_branch
          %214 = sbr.rel (%p212) target = $region20
        $region19: #{att_feat_extractor_forward.1} parent=11 // pred_region
          _
        $region20: #{att_feat_extractor_forward.1} parent=11 // pred_fallthru
          _
        // Predicated region
        $region21: #{att_feat_extractor_forward.1} parent=11 // pred_check
          %p215 = pneg %p105
        $region22: #{att_feat_extractor_forward.1} parent=11 // pred_check_branch
          %217 = sbr.rel (%p215) target = $region24
        $region23: #{att_feat_extractor_forward.1} parent=11 // pred_region
          _
        $region24: #{att_feat_extractor_forward.1} parent=11 // pred_fallthru
          _
        // Predicated region
        $region25: #{att_feat_extractor_forward.1} parent=11 // pred_check
          %p218 = pneg %p126
        $region26: #{att_feat_extractor_forward.1} parent=11 // pred_check_branch
          %220 = sbr.rel (%p218) target = $region28
        $region27: #{att_feat_extractor_forward.1} parent=11 // pred_region
          _
        $region28: #{att_feat_extractor_forward.1} parent=11 // pred_fallthru
          _
        // Predicated region
        $region29: #{att_feat_extractor_forward.1} parent=11 // pred_check
          %p221 = pneg %p147
        $region30: #{att_feat_extractor_forward.1} parent=11 // pred_check_branch
          %223 = sbr.rel (%p221) target = $region32
        $region31: #{att_feat_extractor_forward.1} parent=11 // pred_region
          _
        $region32: #{att_feat_extractor_forward.1} parent=11 // pred_fallthru
          _
        // Predicated region
        $region33: #{att_feat_extractor_forward.1} parent=11 // pred_check
          %p224 = pneg %p168
        $region34: #{att_feat_extractor_forward.1} parent=11 // pred_check_branch
          %226 = sbr.rel (%p224) target = $region36
        $region35: #{att_feat_extractor_forward.1} parent=11 // pred_region
          _
        $region36: #{att_feat_extractor_forward.1} parent=11 // pred_fallthru
          _
      $region12: #{att_feat_extractor_forward.1} parent=5 // pred_fallthru
        _
      %p227 = scmp.lt.s32.totalorder %s16, 2
      // Predicated region
      $region37: #{att_feat_extractor_forward.1} parent=5 // pred_check
        %p228 = pneg %p227
      $region38: #{att_feat_extractor_forward.1} parent=5 // pred_check_branch
        %230 = sbr.rel (%p228) target = $region40
      $region39: #{att_feat_extractor_forward.1} parent=5 // pred_region
        // Predicated region
        $region41: #{att_feat_extractor_forward.1} parent=39 // pred_check
          %p231 = pneg %p36
        $region42: #{att_feat_extractor_forward.1} parent=39 // pred_check_branch
          %233 = sbr.rel (%p231) target = $region44
        $region43: #{att_feat_extractor_forward.1} parent=39 // pred_region
          %p234 = scmp.lt.s32.totalorder %s16, 1
          %s235 = scalar_select %p234, %s16, 1
          %s236 = smul.addr %s235, 8
          %s237 = smul.addr %s236, 4
          %s238 = scalar_lea.vmem %s0, %s237
        $region44: #{att_feat_extractor_forward.1} parent=39 // pred_fallthru
          _
      $region40: #{att_feat_extractor_forward.1} parent=5 // pred_fallthru
        _
      %p239 = scmp.le.s32.totalorder 1, %s16
      %p240 = scmp.lt.s32.totalorder %s16, 3
      %p241 = pnand %p239, %p240
      %p242 = pneg %p241
      // Predicated region
      $region45: #{att_feat_extractor_forward.1} parent=5 // pred_check
        _
      $region46: #{att_feat_extractor_forward.1} parent=5 // pred_check_branch
        %244 = sbr.rel (%p241) target = $region48
      $region47: #{att_feat_extractor_forward.1} parent=5 // pred_region
        %s245 = ssub.s32 %s16, 1
        %p246 = scmp.lt.s32.totalorder %s21, 1
        %s247 = scalar_select %p246, %s21, 1
        %s248 = smul.addr %s247, 8
        %s249 = smul.addr %s248, 4
        %s250 = scalar_lea.vmem %s0, %s249
        %p251 = pneg %p42
        %p252 = pneg %p39
        %p253 = pneg %p63
        %p254 = pneg %p60
        %p255 = pneg %p84
        %p256 = pneg %p81
        %p257 = pneg %p105
        %p258 = pneg %p102
        %p259 = pneg %p126
        %p260 = pneg %p123
        %p261 = pneg %p147
        %p262 = pneg %p144
        %p263 = pneg %p168
        %p264 = pneg %p165
        %p265 = pneg %p194
        %p266 = pneg %p191
        %s267 = sand.u32 %s181, 1
        %s268 = scalar_lea.sflag [#allocation3], %s267
        %s269 = sand.u32 %s181, 1
        %s270 = smul.addr %s269, 8
        %s271 = scalar_lea.vmem [#allocation2], %s270
        %p272 = scmp.lt.s32.totalorder %s21, 1
        %s273 = scalar_select %p272, %s21, 1
        %s274 = smul.addr %s273, 8
        %s275 = smul.addr %s274, 4
        %s276 = scalar_lea.vmem %s0, %s275
        %v278 = vld [vmem:[%s276] sm:$0xff]
        %v279 = vld [vmem:[%s276 + $0x8] sm:$0xff]
        %v280 = vld [vmem:[%s276 + $0x10] sm:$0xff]
        %v281 = vld [vmem:[%s276 + $0x18] sm:$0xff]
        %v282 = vld [vmem:[%s1] sm:$0xff]
        %v283 = vld [vmem:[%s1 + $0x8] sm:$0xff]
        %v284 = vld [vmem:[%s1 + $0x10] sm:$0xff]
        %v285 = vld [vmem:[%s1 + $0x18] sm:$0xff]
        %v286 = vld [vmem:[%s1 + $0x20] sm:$0xff]
        %v287 = vld [vmem:[%s1 + $0x28] sm:$0xff]
        %v288 = vld [vmem:[%s1 + $0x30] sm:$0xff]
        %v289 = vld [vmem:[%s1 + $0x38] sm:$0xff]
        %v290 = vld [vmem:[%s1 + $0x40] sm:$0xff]
        %v291 = vld [vmem:[%s1 + $0x48] sm:$0xff]
        %v292 = vld [vmem:[%s1 + $0x50] sm:$0xff]
        %v293 = vld [vmem:[%s1 + $0x58] sm:$0xff]
        %v294 = vld [vmem:[%s1 + $0x60] sm:$0xff]
        %v295 = vld [vmem:[%s1 + $0x68] sm:$0xff]
        %v296 = vld [vmem:[%s1 + $0x70] sm:$0xff]
        %v297 = vld [vmem:[%s1 + $0x78] sm:$0xff]
        %v298 = vld [vmem:[%s1 + $0x80] sm:$0xff]
        %v299 = vld [vmem:[%s1 + $0x88] sm:$0xff]
        %v300 = vld [vmem:[%s1 + $0x90] sm:$0xff]
        %v301 = vld [vmem:[%s1 + $0x98] sm:$0xff]
        %v302 = vld [vmem:[%s1 + $0xa0] sm:$0xff]
        %v303 = vld [vmem:[%s1 + $0xa8] sm:$0xff]
        %v304 = vld [vmem:[%s1 + $0xb0] sm:$0xff]
        %v305 = vld [vmem:[%s1 + $0xb8] sm:$0xff]
        %v306 = vld [vmem:[%s1 + $0xc0] sm:$0xff]
        %v307 = vld [vmem:[%s1 + $0xc8] sm:$0xff]
        %v308 = vld [vmem:[%s1 + $0xd0] sm:$0xff]
        %v309 = vld [vmem:[%s1 + $0xd8] sm:$0xff]
        %v310 = vld [vmem:[%s1 + $0xe0] sm:$0xff]
        %v311 = vld [vmem:[%s1 + $0xe8] sm:$0xff]
        %v312 = vld [vmem:[%s1 + $0xf0] sm:$0xff]
        %v313 = vld [vmem:[%s1 + $0xf8] sm:$0xff]
        %v314 = vld [vmem:[%s1 + $0x100] sm:$0xff]
        %v315 = vld [vmem:[%s1 + $0x108] sm:$0xff]
        %v316 = vld [vmem:[%s1 + $0x110] sm:$0xff]
        %v317 = vld [vmem:[%s1 + $0x118] sm:$0xff]
        %v318 = vld [vmem:[%s1 + $0x120] sm:$0xff]
        %v319 = vld [vmem:[%s1 + $0x128] sm:$0xff]
        %v320 = vld [vmem:[%s1 + $0x130] sm:$0xff]
        %v321 = vld [vmem:[%s1 + $0x138] sm:$0xff]
        %v322 = vld [vmem:[%s1 + $0x140] sm:$0xff]
        %v323 = vld [vmem:[%s1 + $0x148] sm:$0xff]
        %v324 = vld [vmem:[%s1 + $0x150] sm:$0xff]
        %v325 = vld [vmem:[%s1 + $0x158] sm:$0xff]
        %v326 = vld [vmem:[%s1 + $0x160] sm:$0xff]
        %v327 = vld [vmem:[%s1 + $0x168] sm:$0xff]
        %v328 = vld [vmem:[%s1 + $0x170] sm:$0xff]
        %v329 = vld [vmem:[%s1 + $0x178] sm:$0xff]
        %v330 = vld [vmem:[%s1 + $0x180] sm:$0xff]
        %v331 = vld [vmem:[%s1 + $0x188] sm:$0xff]
        %v332 = vld [vmem:[%s1 + $0x190] sm:$0xff]
        %v333 = vld [vmem:[%s1 + $0x198] sm:$0xff]
        %v334 = vld [vmem:[%s1 + $0x1a0] sm:$0xff]
        %v335 = vld [vmem:[%s1 + $0x1a8] sm:$0xff]
        %v336 = vld [vmem:[%s1 + $0x1b0] sm:$0xff]
        %v337 = vld [vmem:[%s1 + $0x1b8] sm:$0xff]
        %v338 = vld [vmem:[%s1 + $0x1c0] sm:$0xff]
        %v339 = vld [vmem:[%s1 + $0x1c8] sm:$0xff]
        %v340 = vld [vmem:[%s1 + $0x1d0] sm:$0xff]
        %v341 = vld [vmem:[%s1 + $0x1d8] sm:$0xff]
        %v342 = vld [vmem:[%s1 + $0x1e0] sm:$0xff]
        %v343 = vld [vmem:[%s1 + $0x1e8] sm:$0xff]
        %v344 = vld [vmem:[%s1 + $0x1f0] sm:$0xff]
        %v345 = vld [vmem:[%s1 + $0x1f8] sm:$0xff]
        %v346 = vld [vmem:[%s1 + $0x200] sm:$0xff]
        %v347 = vld [vmem:[%s1 + $0x208] sm:$0xff]
        %v348 = vld [vmem:[%s1 + $0x210] sm:$0xff]
        %v349 = vld [vmem:[%s1 + $0x218] sm:$0xff]
        %v350 = vld [vmem:[%s1 + $0x220] sm:$0xff]
        %v351 = vld [vmem:[%s1 + $0x228] sm:$0xff]
        %v352 = vld [vmem:[%s1 + $0x230] sm:$0xff]
        %v353 = vld [vmem:[%s1 + $0x238] sm:$0xff]
        %v354 = vld [vmem:[%s1 + $0x240] sm:$0xff]
        %v355 = vld [vmem:[%s1 + $0x248] sm:$0xff]
        %v356 = vld [vmem:[%s1 + $0x250] sm:$0xff]
        %v357 = vld [vmem:[%s1 + $0x258] sm:$0xff]
        %v358 = vld [vmem:[%s1 + $0x260] sm:$0xff]
        %v359 = vld [vmem:[%s1 + $0x268] sm:$0xff]
        %v360 = vld [vmem:[%s1 + $0x270] sm:$0xff]
        %v361 = vld [vmem:[%s1 + $0x278] sm:$0xff]
        %v362 = vld [vmem:[%s1 + $0x280] sm:$0xff]
        %v363 = vld [vmem:[%s1 + $0x288] sm:$0xff]
        %v364 = vld [vmem:[%s1 + $0x290] sm:$0xff]
        %v365 = vld [vmem:[%s1 + $0x298] sm:$0xff]
        %v366 = vld [vmem:[%s1 + $0x2a0] sm:$0xff]
        %v367 = vld [vmem:[%s1 + $0x2a8] sm:$0xff]
        %v368 = vld [vmem:[%s1 + $0x2b0] sm:$0xff]
        %v369 = vld [vmem:[%s1 + $0x2b8] sm:$0xff]
        %v370 = vld [vmem:[%s1 + $0x2c0] sm:$0xff]
        %v371 = vld [vmem:[%s1 + $0x2c8] sm:$0xff]
        %v372 = vld [vmem:[%s1 + $0x2d0] sm:$0xff]
        %v373 = vld [vmem:[%s1 + $0x2d8] sm:$0xff]
        %v374 = vld [vmem:[%s1 + $0x2e0] sm:$0xff]
        %v375 = vld [vmem:[%s1 + $0x2e8] sm:$0xff]
        %v376 = vld [vmem:[%s1 + $0x2f0] sm:$0xff]
        %v377 = vld [vmem:[%s1 + $0x2f8] sm:$0xff]
        %v378 = vld [vmem:[%s1 + $0x300] sm:$0xff]
        %v379 = vld [vmem:[%s1 + $0x308] sm:$0xff]
        %v380 = vld [vmem:[%s1 + $0x310] sm:$0xff]
        %v381 = vld [vmem:[%s1 + $0x318] sm:$0xff]
        %v382 = vld [vmem:[%s1 + $0x320] sm:$0xff]
        %v383 = vld [vmem:[%s1 + $0x328] sm:$0xff]
        %v384 = vld [vmem:[%s1 + $0x330] sm:$0xff]
        %v385 = vld [vmem:[%s1 + $0x338] sm:$0xff]
        %v386 = vld [vmem:[%s1 + $0x340] sm:$0xff]
        %v387 = vld [vmem:[%s1 + $0x348] sm:$0xff]
        %v388 = vld [vmem:[%s1 + $0x350] sm:$0xff]
        %v389 = vld [vmem:[%s1 + $0x358] sm:$0xff]
        %v390 = vld [vmem:[%s1 + $0x360] sm:$0xff]
        %v391 = vld [vmem:[%s1 + $0x368] sm:$0xff]
        %v392 = vld [vmem:[%s1 + $0x370] sm:$0xff]
        %v393 = vld [vmem:[%s1 + $0x378] sm:$0xff]
        %v394 = vld [vmem:[%s1 + $0x380] sm:$0xff]
        %v395 = vld [vmem:[%s1 + $0x388] sm:$0xff]
        %v396 = vld [vmem:[%s1 + $0x390] sm:$0xff]
        %v397 = vld [vmem:[%s1 + $0x398] sm:$0xff]
        %v398 = vld [vmem:[%s1 + $0x3a0] sm:$0xff]
        %v399 = vld [vmem:[%s1 + $0x3a8] sm:$0xff]
        %v400 = vld [vmem:[%s1 + $0x3b0] sm:$0xff]
        %v401 = vld [vmem:[%s1 + $0x3b8] sm:$0xff]
        %v402 = vld [vmem:[%s1 + $0x3c0] sm:$0xff]
        %v403 = vld [vmem:[%s1 + $0x3c8] sm:$0xff]
        %v404 = vld [vmem:[%s1 + $0x3d0] sm:$0xff]
        %v405 = vld [vmem:[%s1 + $0x3d8] sm:$0xff]
        %v406 = vld [vmem:[%s1 + $0x3e0] sm:$0xff]
        %v407 = vld [vmem:[%s1 + $0x3e8] sm:$0xff]
        %v408 = vld [vmem:[%s1 + $0x3f0] sm:$0xff]
        %v409 = vld [vmem:[%s1 + $0x3f8] sm:$0xff]
        %v410 = vld [vmem:[%s2] sm:$0x3]
        %v412 = vperm.slane %v410, 0
        %v413 = vperm.slane %v410, 1
        %v420 = vunpack.c.l.b16 %v278
        %v421 = vunpack.c.h.b16 %v278
        %v422 = vunpack.c.l.b16 %v279
        %v423 = vunpack.c.h.b16 %v279
        %v424 = vunpack.c.l.b16 %v280
        %v425 = vunpack.c.h.b16 %v280
        %v426 = vunpack.c.l.b16 %v281
        %v427 = vunpack.c.h.b16 %v281
        %v428 = vpack.c.b16 %v420, %v420
        %v429 = vpack.c.b16 %v421, %v421
        %v430 = vpack.c.b16 %v422, %v422
        %v431 = vpack.c.b16 %v423, %v423
        %v432 = vpack.c.b16 %v424, %v424
        %v433 = vpack.c.b16 %v425, %v425
        %v434 = vpack.c.b16 %v426, %v426
        %v435 = vpack.c.b16 %v427, %v427
        %v572 = vunpack.c.l.b16 %v282
        %v573 = vunpack.c.h.b16 %v282
        %v574 = vunpack.c.l.b16 %v283
        %v575 = vunpack.c.h.b16 %v283
        %v576 = vunpack.c.l.b16 %v284
        %v577 = vunpack.c.h.b16 %v284
        %v578 = vunpack.c.l.b16 %v285
        %v579 = vunpack.c.h.b16 %v285
        %v580 = vunpack.c.l.b16 %v286
        %v581 = vunpack.c.h.b16 %v286
        %v582 = vunpack.c.l.b16 %v287
        %v583 = vunpack.c.h.b16 %v287
        %v584 = vunpack.c.l.b16 %v288
        %v585 = vunpack.c.h.b16 %v288
        %v586 = vunpack.c.l.b16 %v289
        %v587 = vunpack.c.h.b16 %v289
        %v588 = vunpack.c.l.b16 %v290
        %v589 = vunpack.c.h.b16 %v290
        %v590 = vunpack.c.l.b16 %v291
        %v591 = vunpack.c.h.b16 %v291
        %v592 = vunpack.c.l.b16 %v292
        %v593 = vunpack.c.h.b16 %v292
        %v594 = vunpack.c.l.b16 %v293
        %v595 = vunpack.c.h.b16 %v293
        %v596 = vunpack.c.l.b16 %v294
        %v597 = vunpack.c.h.b16 %v294
        %v598 = vunpack.c.l.b16 %v295
        %v599 = vunpack.c.h.b16 %v295
        %v600 = vunpack.c.l.b16 %v296
        %v601 = vunpack.c.h.b16 %v296
        %v602 = vunpack.c.l.b16 %v297
        %v603 = vunpack.c.h.b16 %v297
        %v604 = vunpack.c.l.b16 %v298
        %v605 = vunpack.c.h.b16 %v298
        %v606 = vunpack.c.l.b16 %v299
        %v607 = vunpack.c.h.b16 %v299
        %v608 = vunpack.c.l.b16 %v300
        %v609 = vunpack.c.h.b16 %v300
        %v610 = vunpack.c.l.b16 %v301
        %v611 = vunpack.c.h.b16 %v301
        %v612 = vunpack.c.l.b16 %v302
        %v613 = vunpack.c.h.b16 %v302
        %v614 = vunpack.c.l.b16 %v303
        %v615 = vunpack.c.h.b16 %v303
        %v616 = vunpack.c.l.b16 %v304
        %v617 = vunpack.c.h.b16 %v304
        %v618 = vunpack.c.l.b16 %v305
        %v619 = vunpack.c.h.b16 %v305
        %v620 = vunpack.c.l.b16 %v306
        %v621 = vunpack.c.h.b16 %v306
        %v622 = vunpack.c.l.b16 %v307
        %v623 = vunpack.c.h.b16 %v307
        %v624 = vunpack.c.l.b16 %v308
        %v625 = vunpack.c.h.b16 %v308
        %v626 = vunpack.c.l.b16 %v309
        %v627 = vunpack.c.h.b16 %v309
        %v628 = vunpack.c.l.b16 %v310
        %v629 = vunpack.c.h.b16 %v310
        %v630 = vunpack.c.l.b16 %v311
        %v631 = vunpack.c.h.b16 %v311
        %v632 = vunpack.c.l.b16 %v312
        %v633 = vunpack.c.h.b16 %v312
        %v634 = vunpack.c.l.b16 %v313
        %v635 = vunpack.c.h.b16 %v313
        %v636 = vunpack.c.l.b16 %v314
        %v637 = vunpack.c.h.b16 %v314
        %v638 = vunpack.c.l.b16 %v315
        %v639 = vunpack.c.h.b16 %v315
        %v640 = vunpack.c.l.b16 %v316
        %v641 = vunpack.c.h.b16 %v316
        %v642 = vunpack.c.l.b16 %v317
        %v643 = vunpack.c.h.b16 %v317
        %v644 = vunpack.c.l.b16 %v318
        %v645 = vunpack.c.h.b16 %v318
        %v646 = vunpack.c.l.b16 %v319
        %v647 = vunpack.c.h.b16 %v319
        %v648 = vunpack.c.l.b16 %v320
        %v649 = vunpack.c.h.b16 %v320
        %v650 = vunpack.c.l.b16 %v321
        %v651 = vunpack.c.h.b16 %v321
        %v652 = vunpack.c.l.b16 %v322
        %v653 = vunpack.c.h.b16 %v322
        %v654 = vunpack.c.l.b16 %v323
        %v655 = vunpack.c.h.b16 %v323
        %v656 = vunpack.c.l.b16 %v324
        %v657 = vunpack.c.h.b16 %v324
        %v658 = vunpack.c.l.b16 %v325
        %v659 = vunpack.c.h.b16 %v325
        %v660 = vunpack.c.l.b16 %v326
        %v661 = vunpack.c.h.b16 %v326
        %v662 = vunpack.c.l.b16 %v327
        %v663 = vunpack.c.h.b16 %v327
        %v664 = vunpack.c.l.b16 %v328
        %v665 = vunpack.c.h.b16 %v328
        %v666 = vunpack.c.l.b16 %v329
        %v667 = vunpack.c.h.b16 %v329
        %v668 = vunpack.c.l.b16 %v330
        %v669 = vunpack.c.h.b16 %v330
        %v670 = vunpack.c.l.b16 %v331
        %v671 = vunpack.c.h.b16 %v331
        %v672 = vunpack.c.l.b16 %v332
        %v673 = vunpack.c.h.b16 %v332
        %v674 = vunpack.c.l.b16 %v333
        %v675 = vunpack.c.h.b16 %v333
        %v676 = vunpack.c.l.b16 %v334
        %v677 = vunpack.c.h.b16 %v334
        %v678 = vunpack.c.l.b16 %v335
        %v679 = vunpack.c.h.b16 %v335
        %v680 = vunpack.c.l.b16 %v336
        %v681 = vunpack.c.h.b16 %v336
        %v682 = vunpack.c.l.b16 %v337
        %v683 = vunpack.c.h.b16 %v337
        %v684 = vunpack.c.l.b16 %v338
        %v685 = vunpack.c.h.b16 %v338
        %v686 = vunpack.c.l.b16 %v339
        %v687 = vunpack.c.h.b16 %v339
        %v688 = vunpack.c.l.b16 %v340
        %v689 = vunpack.c.h.b16 %v340
        %v690 = vunpack.c.l.b16 %v341
        %v691 = vunpack.c.h.b16 %v341
        %v692 = vunpack.c.l.b16 %v342
        %v693 = vunpack.c.h.b16 %v342
        %v694 = vunpack.c.l.b16 %v343
        %v695 = vunpack.c.h.b16 %v343
        %v696 = vunpack.c.l.b16 %v344
        %v697 = vunpack.c.h.b16 %v344
        %v698 = vunpack.c.l.b16 %v345
        %v699 = vunpack.c.h.b16 %v345
        %v700 = vunpack.c.l.b16 %v346
        %v701 = vunpack.c.h.b16 %v346
        %v702 = vunpack.c.l.b16 %v347
        %v703 = vunpack.c.h.b16 %v347
        %v704 = vunpack.c.l.b16 %v348
        %v705 = vunpack.c.h.b16 %v348
        %v706 = vunpack.c.l.b16 %v349
        %v707 = vunpack.c.h.b16 %v349
        %v708 = vunpack.c.l.b16 %v350
        %v709 = vunpack.c.h.b16 %v350
        %v710 = vunpack.c.l.b16 %v351
        %v711 = vunpack.c.h.b16 %v351
        %v712 = vunpack.c.l.b16 %v352
        %v713 = vunpack.c.h.b16 %v352
        %v714 = vunpack.c.l.b16 %v353
        %v715 = vunpack.c.h.b16 %v353
        %v716 = vunpack.c.l.b16 %v354
        %v717 = vunpack.c.h.b16 %v354
        %v718 = vunpack.c.l.b16 %v355
        %v719 = vunpack.c.h.b16 %v355
        %v720 = vunpack.c.l.b16 %v356
        %v721 = vunpack.c.h.b16 %v356
        %v722 = vunpack.c.l.b16 %v357
        %v723 = vunpack.c.h.b16 %v357
        %v724 = vunpack.c.l.b16 %v358
        %v725 = vunpack.c.h.b16 %v358
        %v726 = vunpack.c.l.b16 %v359
        %v727 = vunpack.c.h.b16 %v359
        %v728 = vunpack.c.l.b16 %v360
        %v729 = vunpack.c.h.b16 %v360
        %v730 = vunpack.c.l.b16 %v361
        %v731 = vunpack.c.h.b16 %v361
        %v732 = vunpack.c.l.b16 %v362
        %v733 = vunpack.c.h.b16 %v362
        %v734 = vunpack.c.l.b16 %v363
        %v735 = vunpack.c.h.b16 %v363
        %v736 = vunpack.c.l.b16 %v364
        %v737 = vunpack.c.h.b16 %v364
        %v738 = vunpack.c.l.b16 %v365
        %v739 = vunpack.c.h.b16 %v365
        %v740 = vunpack.c.l.b16 %v366
        %v741 = vunpack.c.h.b16 %v366
        %v742 = vunpack.c.l.b16 %v367
        %v743 = vunpack.c.h.b16 %v367
        %v744 = vunpack.c.l.b16 %v368
        %v745 = vunpack.c.h.b16 %v368
        %v746 = vunpack.c.l.b16 %v369
        %v747 = vunpack.c.h.b16 %v369
        %v748 = vunpack.c.l.b16 %v370
        %v749 = vunpack.c.h.b16 %v370
        %v750 = vunpack.c.l.b16 %v371
        %v751 = vunpack.c.h.b16 %v371
        %v752 = vunpack.c.l.b16 %v372
        %v753 = vunpack.c.h.b16 %v372
        %v754 = vunpack.c.l.b16 %v373
        %v755 = vunpack.c.h.b16 %v373
        %v756 = vunpack.c.l.b16 %v374
        %v757 = vunpack.c.h.b16 %v374
        %v758 = vunpack.c.l.b16 %v375
        %v759 = vunpack.c.h.b16 %v375
        %v760 = vunpack.c.l.b16 %v376
        %v761 = vunpack.c.h.b16 %v376
        %v762 = vunpack.c.l.b16 %v377
        %v763 = vunpack.c.h.b16 %v377
        %v764 = vunpack.c.l.b16 %v378
        %v765 = vunpack.c.h.b16 %v378
        %v766 = vunpack.c.l.b16 %v379
        %v767 = vunpack.c.h.b16 %v379
        %v768 = vunpack.c.l.b16 %v380
        %v769 = vunpack.c.h.b16 %v380
        %v770 = vunpack.c.l.b16 %v381
        %v771 = vunpack.c.h.b16 %v381
        %v772 = vunpack.c.l.b16 %v382
        %v773 = vunpack.c.h.b16 %v382
        %v774 = vunpack.c.l.b16 %v383
        %v775 = vunpack.c.h.b16 %v383
        %v776 = vunpack.c.l.b16 %v384
        %v777 = vunpack.c.h.b16 %v384
        %v778 = vunpack.c.l.b16 %v385
        %v779 = vunpack.c.h.b16 %v385
        %v780 = vunpack.c.l.b16 %v386
        %v781 = vunpack.c.h.b16 %v386
        %v782 = vunpack.c.l.b16 %v387
        %v783 = vunpack.c.h.b16 %v387
        %v784 = vunpack.c.l.b16 %v388
        %v785 = vunpack.c.h.b16 %v388
        %v786 = vunpack.c.l.b16 %v389
        %v787 = vunpack.c.h.b16 %v389
        %v788 = vunpack.c.l.b16 %v390
        %v789 = vunpack.c.h.b16 %v390
        %v790 = vunpack.c.l.b16 %v391
        %v791 = vunpack.c.h.b16 %v391
        %v792 = vunpack.c.l.b16 %v392
        %v793 = vunpack.c.h.b16 %v392
        %v794 = vunpack.c.l.b16 %v393
        %v795 = vunpack.c.h.b16 %v393
        %v796 = vunpack.c.l.b16 %v394
        %v797 = vunpack.c.h.b16 %v394
        %v798 = vunpack.c.l.b16 %v395
        %v799 = vunpack.c.h.b16 %v395
        %v800 = vunpack.c.l.b16 %v396
        %v801 = vunpack.c.h.b16 %v396
        %v802 = vunpack.c.l.b16 %v397
        %v803 = vunpack.c.h.b16 %v397
        %v804 = vunpack.c.l.b16 %v398
        %v805 = vunpack.c.h.b16 %v398
        %v806 = vunpack.c.l.b16 %v399
        %v807 = vunpack.c.h.b16 %v399
        %v808 = vunpack.c.l.b16 %v400
        %v809 = vunpack.c.h.b16 %v400
        %v810 = vunpack.c.l.b16 %v401
        %v811 = vunpack.c.h.b16 %v401
        %v812 = vunpack.c.l.b16 %v402
        %v813 = vunpack.c.h.b16 %v402
        %v814 = vunpack.c.l.b16 %v403
        %v815 = vunpack.c.h.b16 %v403
        %v816 = vunpack.c.l.b16 %v404
        %v817 = vunpack.c.h.b16 %v404
        %v818 = vunpack.c.l.b16 %v405
        %v819 = vunpack.c.h.b16 %v405
        %v820 = vunpack.c.l.b16 %v406
        %v821 = vunpack.c.h.b16 %v406
        %v822 = vunpack.c.l.b16 %v407
        %v823 = vunpack.c.h.b16 %v407
        %v824 = vunpack.c.l.b16 %v408
        %v825 = vunpack.c.h.b16 %v408
        %v826 = vunpack.c.l.b16 %v409
        %v827 = vunpack.c.h.b16 %v409
        %v828 = vpack.c.b16 %v574, %v572
        %v829 = vpack.c.b16 %v575, %v573
        %v830 = vpack.c.b16 %v578, %v576
        %v831 = vpack.c.b16 %v579, %v577
        %v832 = vpack.c.b16 %v582, %v580
        %v833 = vpack.c.b16 %v583, %v581
        %v834 = vpack.c.b16 %v586, %v584
        %v835 = vpack.c.b16 %v587, %v585
        %v836 = vpack.c.b16 %v590, %v588
        %v837 = vpack.c.b16 %v591, %v589
        %v838 = vpack.c.b16 %v594, %v592
        %v839 = vpack.c.b16 %v595, %v593
        %v840 = vpack.c.b16 %v598, %v596
        %v841 = vpack.c.b16 %v599, %v597
        %v842 = vpack.c.b16 %v602, %v600
        %v843 = vpack.c.b16 %v603, %v601
        %v844 = vpack.c.b16 %v606, %v604
        %v845 = vpack.c.b16 %v607, %v605
        %v846 = vpack.c.b16 %v610, %v608
        %v847 = vpack.c.b16 %v611, %v609
        %v848 = vpack.c.b16 %v614, %v612
        %v849 = vpack.c.b16 %v615, %v613
        %v850 = vpack.c.b16 %v618, %v616
        %v851 = vpack.c.b16 %v619, %v617
        %v852 = vpack.c.b16 %v622, %v620
        %v853 = vpack.c.b16 %v623, %v621
        %v854 = vpack.c.b16 %v626, %v624
        %v855 = vpack.c.b16 %v627, %v625
        %v856 = vpack.c.b16 %v630, %v628
        %v857 = vpack.c.b16 %v631, %v629
        %v858 = vpack.c.b16 %v634, %v632
        %v859 = vpack.c.b16 %v635, %v633
        %v860 = vpack.c.b16 %v638, %v636
        %v861 = vpack.c.b16 %v639, %v637
        %v862 = vpack.c.b16 %v642, %v640
        %v863 = vpack.c.b16 %v643, %v641
        %v864 = vpack.c.b16 %v646, %v644
        %v865 = vpack.c.b16 %v647, %v645
        %v866 = vpack.c.b16 %v650, %v648
        %v867 = vpack.c.b16 %v651, %v649
        %v868 = vpack.c.b16 %v654, %v652
        %v869 = vpack.c.b16 %v655, %v653
        %v870 = vpack.c.b16 %v658, %v656
        %v871 = vpack.c.b16 %v659, %v657
        %v872 = vpack.c.b16 %v662, %v660
        %v873 = vpack.c.b16 %v663, %v661
        %v874 = vpack.c.b16 %v666, %v664
        %v875 = vpack.c.b16 %v667, %v665
        %v876 = vpack.c.b16 %v670, %v668
        %v877 = vpack.c.b16 %v671, %v669
        %v878 = vpack.c.b16 %v674, %v672
        %v879 = vpack.c.b16 %v675, %v673
        %v880 = vpack.c.b16 %v678, %v676
        %v881 = vpack.c.b16 %v679, %v677
        %v882 = vpack.c.b16 %v682, %v680
        %v883 = vpack.c.b16 %v683, %v681
        %v884 = vpack.c.b16 %v686, %v684
        %v885 = vpack.c.b16 %v687, %v685
        %v886 = vpack.c.b16 %v690, %v688
        %v887 = vpack.c.b16 %v691, %v689
        %v888 = vpack.c.b16 %v694, %v692
        %v889 = vpack.c.b16 %v695, %v693
        %v890 = vpack.c.b16 %v698, %v696
        %v891 = vpack.c.b16 %v699, %v697
        %v892 = vpack.c.b16 %v702, %v700
        %v893 = vpack.c.b16 %v703, %v701
        %v894 = vpack.c.b16 %v706, %v704
        %v895 = vpack.c.b16 %v707, %v705
        %v896 = vpack.c.b16 %v710, %v708
        %v897 = vpack.c.b16 %v711, %v709
        %v898 = vpack.c.b16 %v714, %v712
        %v899 = vpack.c.b16 %v715, %v713
        %v900 = vpack.c.b16 %v718, %v716
        %v901 = vpack.c.b16 %v719, %v717
        %v902 = vpack.c.b16 %v722, %v720
        %v903 = vpack.c.b16 %v723, %v721
        %v904 = vpack.c.b16 %v726, %v724
        %v905 = vpack.c.b16 %v727, %v725
        %v906 = vpack.c.b16 %v730, %v728
        %v907 = vpack.c.b16 %v731, %v729
        %v908 = vpack.c.b16 %v734, %v732
        %v909 = vpack.c.b16 %v735, %v733
        %v910 = vpack.c.b16 %v738, %v736
        %v911 = vpack.c.b16 %v739, %v737
        %v912 = vpack.c.b16 %v742, %v740
        %v913 = vpack.c.b16 %v743, %v741
        %v914 = vpack.c.b16 %v746, %v744
        %v915 = vpack.c.b16 %v747, %v745
        %v916 = vpack.c.b16 %v750, %v748
        %v917 = vpack.c.b16 %v751, %v749
        %v918 = vpack.c.b16 %v754, %v752
        %v919 = vpack.c.b16 %v755, %v753
        %v920 = vpack.c.b16 %v758, %v756
        %v921 = vpack.c.b16 %v759, %v757
        %v922 = vpack.c.b16 %v762, %v760
        %v923 = vpack.c.b16 %v763, %v761
        %v924 = vpack.c.b16 %v766, %v764
        %v925 = vpack.c.b16 %v767, %v765
        %v926 = vpack.c.b16 %v770, %v768
        %v927 = vpack.c.b16 %v771, %v769
        %v928 = vpack.c.b16 %v774, %v772
        %v929 = vpack.c.b16 %v775, %v773
        %v930 = vpack.c.b16 %v778, %v776
        %v931 = vpack.c.b16 %v779, %v777
        %v932 = vpack.c.b16 %v782, %v780
        %v933 = vpack.c.b16 %v783, %v781
        %v934 = vpack.c.b16 %v786, %v784
        %v935 = vpack.c.b16 %v787, %v785
        %v936 = vpack.c.b16 %v790, %v788
        %v937 = vpack.c.b16 %v791, %v789
        %v938 = vpack.c.b16 %v794, %v792
        %v939 = vpack.c.b16 %v795, %v793
        %v940 = vpack.c.b16 %v798, %v796
        %v941 = vpack.c.b16 %v799, %v797
        %v942 = vpack.c.b16 %v802, %v800
        %v943 = vpack.c.b16 %v803, %v801
        %v944 = vpack.c.b16 %v806, %v804
        %v945 = vpack.c.b16 %v807, %v805
        %v946 = vpack.c.b16 %v810, %v808
        %v947 = vpack.c.b16 %v811, %v809
        %v948 = vpack.c.b16 %v814, %v812
        %v949 = vpack.c.b16 %v815, %v813
        %v950 = vpack.c.b16 %v818, %v816
        %v951 = vpack.c.b16 %v819, %v817
        %v952 = vpack.c.b16 %v822, %v820
        %v953 = vpack.c.b16 %v823, %v821
        %v954 = vpack.c.b16 %v826, %v824
        %v955 = vpack.c.b16 %v827, %v825
        %1084 = vmatpush.bf16.msra.mxu0 %v842
        %1085 = vmatpush.bf16.msra.mxu0 %v840
        %1086 = vmatpush.bf16.msra.mxu0 %v838
        %1087 = vmatpush.bf16.msra.mxu0 %v836
        %1088 = vmatpush.bf16.msra.mxu0 %v834
        %1089 = vmatpush.bf16.msra.mxu0 %v832
        %1090 = vmatpush.bf16.msra.mxu0 %v830
        %1091 = vmatpush.bf16.msra.mxu0 %v828
        %1092 = vmatmul.bf16.gmra.mxu0 %v428
        %v1093 = vpop.f32.mrf.mxu0
        %v1094 = vadd.f32 %v412, %v1093
        %v1095 = vpop.f32.mrf.mxu0
        %1096 = vdwg.mxu0
        %1097 = vmatpush.bf16.msra.mxu0 %v858
        %1098 = vmatpush.bf16.msra.mxu0 %v856
        %1099 = vmatpush.bf16.msra.mxu0 %v854
        %1100 = vmatpush.bf16.msra.mxu0 %v852
        %1101 = vmatpush.bf16.msra.mxu0 %v850
        %1102 = vmatpush.bf16.msra.mxu0 %v848
        %1103 = vmatpush.bf16.msra.mxu0 %v846
        %1104 = vmatpush.bf16.msra.mxu0 %v844
        %1105 = vmatmul.bf16.gmra.mxu0 %v429
        %v1106 = vpop.f32.mrf.mxu0
        %v1107 = vadd.f32 %v1094, %v1106
        %v1108 = vpop.f32.mrf.mxu0
        %1109 = vdwg.mxu0
        %1110 = vmatpush.bf16.msra.mxu0 %v874
        %1111 = vmatpush.bf16.msra.mxu0 %v872
        %1112 = vmatpush.bf16.msra.mxu0 %v870
        %1113 = vmatpush.bf16.msra.mxu0 %v868
        %1114 = vmatpush.bf16.msra.mxu0 %v866
        %1115 = vmatpush.bf16.msra.mxu0 %v864
        %1116 = vmatpush.bf16.msra.mxu0 %v862
        %1117 = vmatpush.bf16.msra.mxu0 %v860
        %1118 = vmatmul.bf16.gmra.mxu0 %v430
        %v1119 = vpop.f32.mrf.mxu0
        %v1120 = vadd.f32 %v1107, %v1119
        %v1121 = vpop.f32.mrf.mxu0
        %1122 = vdwg.mxu0
        %1123 = vmatpush.bf16.msra.mxu0 %v890
        %1124 = vmatpush.bf16.msra.mxu0 %v888
        %1125 = vmatpush.bf16.msra.mxu0 %v886
        %1126 = vmatpush.bf16.msra.mxu0 %v884
        %1127 = vmatpush.bf16.msra.mxu0 %v882
        %1128 = vmatpush.bf16.msra.mxu0 %v880
        %1129 = vmatpush.bf16.msra.mxu0 %v878
        %1130 = vmatpush.bf16.msra.mxu0 %v876
        %1131 = vmatmul.bf16.gmra.mxu0 %v431
        %v1132 = vpop.f32.mrf.mxu0
        %v1133 = vadd.f32 %v1120, %v1132
        %v1134 = vpop.f32.mrf.mxu0
        %1135 = vdwg.mxu0
        %1136 = vmatpush.bf16.msra.mxu0 %v906
        %1137 = vmatpush.bf16.msra.mxu0 %v904
        %1138 = vmatpush.bf16.msra.mxu0 %v902
        %1139 = vmatpush.bf16.msra.mxu0 %v900
        %1140 = vmatpush.bf16.msra.mxu0 %v898
        %1141 = vmatpush.bf16.msra.mxu0 %v896
        %1142 = vmatpush.bf16.msra.mxu0 %v894
        %1143 = vmatpush.bf16.msra.mxu0 %v892
        %1144 = vmatmul.bf16.gmra.mxu0 %v432
        %v1145 = vpop.f32.mrf.mxu0
        %v1146 = vadd.f32 %v1133, %v1145
        %v1147 = vpop.f32.mrf.mxu0
        %1148 = vdwg.mxu0
        %1149 = vmatpush.bf16.msra.mxu0 %v922
        %1150 = vmatpush.bf16.msra.mxu0 %v920
        %1151 = vmatpush.bf16.msra.mxu0 %v918
        %1152 = vmatpush.bf16.msra.mxu0 %v916
        %1153 = vmatpush.bf16.msra.mxu0 %v914
        %1154 = vmatpush.bf16.msra.mxu0 %v912
        %1155 = vmatpush.bf16.msra.mxu0 %v910
        %1156 = vmatpush.bf16.msra.mxu0 %v908
        %1157 = vmatmul.bf16.gmra.mxu0 %v433
        %v1158 = vpop.f32.mrf.mxu0
        %v1159 = vadd.f32 %v1146, %v1158
        %v1160 = vpop.f32.mrf.mxu0
        %1161 = vdwg.mxu0
        %1162 = vmatpush.bf16.msra.mxu0 %v938
        %1163 = vmatpush.bf16.msra.mxu0 %v936
        %1164 = vmatpush.bf16.msra.mxu0 %v934
        %1165 = vmatpush.bf16.msra.mxu0 %v932
        %1166 = vmatpush.bf16.msra.mxu0 %v930
        %1167 = vmatpush.bf16.msra.mxu0 %v928
        %1168 = vmatpush.bf16.msra.mxu0 %v926
        %1169 = vmatpush.bf16.msra.mxu0 %v924
        %1170 = vmatmul.bf16.gmra.mxu0 %v434
        %v1171 = vpop.f32.mrf.mxu0
        %v1172 = vadd.f32 %v1159, %v1171
        %v1173 = vpop.f32.mrf.mxu0
        %1174 = vdwg.mxu0
        %1175 = vmatpush.bf16.msra.mxu0 %v954
        %1176 = vmatpush.bf16.msra.mxu0 %v952
        %1177 = vmatpush.bf16.msra.mxu0 %v950
        %1178 = vmatpush.bf16.msra.mxu0 %v948
        %1179 = vmatpush.bf16.msra.mxu0 %v946
        %1180 = vmatpush.bf16.msra.mxu0 %v944
        %1181 = vmatpush.bf16.msra.mxu0 %v942
        %1182 = vmatpush.bf16.msra.mxu0 %v940
        %1183 = vmatmul.bf16.gmra.mxu0 %v435
        %v1184 = vpop.f32.mrf.mxu0
        %v1185 = vadd.f32 %v1172, %v1184
        %v1186 = vpop.f32.mrf.mxu0
        %1187 = vdwg.mxu0
        %1188 = vmatpush.bf16.msra.mxu0 %v843
        %1189 = vmatpush.bf16.msra.mxu0 %v841
        %1190 = vmatpush.bf16.msra.mxu0 %v839
        %1191 = vmatpush.bf16.msra.mxu0 %v837
        %1192 = vmatpush.bf16.msra.mxu0 %v835
        %1193 = vmatpush.bf16.msra.mxu0 %v833
        %1194 = vmatpush.bf16.msra.mxu0 %v831
        %1195 = vmatpush.bf16.msra.mxu0 %v829
        %1196 = vmatmul.bf16.gmra.mxu0 %v428
        %v1197 = vpop.f32.mrf.mxu0
        %v1198 = vadd.f32 %v413, %v1197
        %v1199 = vpop.f32.mrf.mxu0
        %1200 = vdwg.mxu0
        %1201 = vmatpush.bf16.msra.mxu0 %v859
        %1202 = vmatpush.bf16.msra.mxu0 %v857
        %1203 = vmatpush.bf16.msra.mxu0 %v855
        %1204 = vmatpush.bf16.msra.mxu0 %v853
        %1205 = vmatpush.bf16.msra.mxu0 %v851
        %1206 = vmatpush.bf16.msra.mxu0 %v849
        %1207 = vmatpush.bf16.msra.mxu0 %v847
        %1208 = vmatpush.bf16.msra.mxu0 %v845
        %1209 = vmatmul.bf16.gmra.mxu0 %v429
        %v1210 = vpop.f32.mrf.mxu0
        %v1211 = vadd.f32 %v1198, %v1210
        %v1212 = vpop.f32.mrf.mxu0
        %1213 = vdwg.mxu0
        %1214 = vmatpush.bf16.msra.mxu0 %v875
        %1215 = vmatpush.bf16.msra.mxu0 %v873
        %1216 = vmatpush.bf16.msra.mxu0 %v871
        %1217 = vmatpush.bf16.msra.mxu0 %v869
        %1218 = vmatpush.bf16.msra.mxu0 %v867
        %1219 = vmatpush.bf16.msra.mxu0 %v865
        %1220 = vmatpush.bf16.msra.mxu0 %v863
        %1221 = vmatpush.bf16.msra.mxu0 %v861
        %1222 = vmatmul.bf16.gmra.mxu0 %v430
        %v1223 = vpop.f32.mrf.mxu0
        %v1224 = vadd.f32 %v1211, %v1223
        %v1225 = vpop.f32.mrf.mxu0
        %1226 = vdwg.mxu0
        %1227 = vmatpush.bf16.msra.mxu0 %v891
        %1228 = vmatpush.bf16.msra.mxu0 %v889
        %1229 = vmatpush.bf16.msra.mxu0 %v887
        %1230 = vmatpush.bf16.msra.mxu0 %v885
        %1231 = vmatpush.bf16.msra.mxu0 %v883
        %1232 = vmatpush.bf16.msra.mxu0 %v881
        %1233 = vmatpush.bf16.msra.mxu0 %v879
        %1234 = vmatpush.bf16.msra.mxu0 %v877
        %1235 = vmatmul.bf16.gmra.mxu0 %v431
        %v1236 = vpop.f32.mrf.mxu0
        %v1237 = vadd.f32 %v1224, %v1236
        %v1238 = vpop.f32.mrf.mxu0
        %1239 = vdwg.mxu0
        %1240 = vmatpush.bf16.msra.mxu0 %v907
        %1241 = vmatpush.bf16.msra.mxu0 %v905
        %1242 = vmatpush.bf16.msra.mxu0 %v903
        %1243 = vmatpush.bf16.msra.mxu0 %v901
        %1244 = vmatpush.bf16.msra.mxu0 %v899
        %1245 = vmatpush.bf16.msra.mxu0 %v897
        %1246 = vmatpush.bf16.msra.mxu0 %v895
        %1247 = vmatpush.bf16.msra.mxu0 %v893
        %1248 = vmatmul.bf16.gmra.mxu0 %v432
        %v1249 = vpop.f32.mrf.mxu0
        %v1250 = vadd.f32 %v1237, %v1249
        %v1251 = vpop.f32.mrf.mxu0
        %1252 = vdwg.mxu0
        %1253 = vmatpush.bf16.msra.mxu0 %v923
        %1254 = vmatpush.bf16.msra.mxu0 %v921
        %1255 = vmatpush.bf16.msra.mxu0 %v919
        %1256 = vmatpush.bf16.msra.mxu0 %v917
        %1257 = vmatpush.bf16.msra.mxu0 %v915
        %1258 = vmatpush.bf16.msra.mxu0 %v913
        %1259 = vmatpush.bf16.msra.mxu0 %v911
        %1260 = vmatpush.bf16.msra.mxu0 %v909
        %1261 = vmatmul.bf16.gmra.mxu0 %v433
        %v1262 = vpop.f32.mrf.mxu0
        %v1263 = vadd.f32 %v1250, %v1262
        %v1264 = vpop.f32.mrf.mxu0
        %1265 = vdwg.mxu0
        %1266 = vmatpush.bf16.msra.mxu0 %v939
        %1267 = vmatpush.bf16.msra.mxu0 %v937
        %1268 = vmatpush.bf16.msra.mxu0 %v935
        %1269 = vmatpush.bf16.msra.mxu0 %v933
        %1270 = vmatpush.bf16.msra.mxu0 %v931
        %1271 = vmatpush.bf16.msra.mxu0 %v929
        %1272 = vmatpush.bf16.msra.mxu0 %v927
        %1273 = vmatpush.bf16.msra.mxu0 %v925
        %1274 = vmatmul.bf16.gmra.mxu0 %v434
        %v1275 = vpop.f32.mrf.mxu0
        %v1276 = vadd.f32 %v1263, %v1275
        %v1277 = vpop.f32.mrf.mxu0
        %1278 = vdwg.mxu0
        %1279 = vmatpush.bf16.msra.mxu0 %v955
        %1280 = vmatpush.bf16.msra.mxu0 %v953
        %1281 = vmatpush.bf16.msra.mxu0 %v951
        %1282 = vmatpush.bf16.msra.mxu0 %v949
        %1283 = vmatpush.bf16.msra.mxu0 %v947
        %1284 = vmatpush.bf16.msra.mxu0 %v945
        %1285 = vmatpush.bf16.msra.mxu0 %v943
        %1286 = vmatpush.bf16.msra.mxu0 %v941
        %1287 = vmatmul.bf16.gmra.mxu0 %v435
        %v1288 = vpop.f32.mrf.mxu0
        %v1289 = vadd.f32 %v1276, %v1288
        %v1290 = vpop.f32.mrf.mxu0
        %1291 = vdwg.mxu0
        %v1292 = vmax.f32 %v1185, 0.0
        %v1293 = vmax.f32 %v1289, 0.0
        %v1294 = vpack.c.bf16 %v1292, %v1292
        %v1295 = vpack.c.bf16 %v1293, %v1293
        %v1296 = vld [vmem:[%s3] sm:$0xf]
        %v1297 = vld [vmem:[%s3 + $0x4] sm:$0xf]
        %v1298 = vld [vmem:[%s3 + $0x8] sm:$0xf]
        %v1299 = vld [vmem:[%s3 + $0xc] sm:$0xf]
        %v1300 = vld [vmem:[%s3 + $0x10] sm:$0xf]
        %v1301 = vld [vmem:[%s3 + $0x14] sm:$0xf]
        %v1302 = vld [vmem:[%s3 + $0x18] sm:$0xf]
        %v1303 = vld [vmem:[%s3 + $0x1c] sm:$0xf]
        %v1304 = vld [vmem:[%s3 + $0x20] sm:$0xf]
        %v1305 = vld [vmem:[%s3 + $0x24] sm:$0xf]
        %v1306 = vld [vmem:[%s3 + $0x28] sm:$0xf]
        %v1307 = vld [vmem:[%s3 + $0x2c] sm:$0xf]
        %v1308 = vld [vmem:[%s3 + $0x30] sm:$0xf]
        %v1309 = vld [vmem:[%s3 + $0x34] sm:$0xf]
        %v1310 = vld [vmem:[%s3 + $0x38] sm:$0xf]
        %v1311 = vld [vmem:[%s3 + $0x3c] sm:$0xf]
        %v1312 = vld [vmem:[%s3 + $0x40] sm:$0xf]
        %v1313 = vld [vmem:[%s3 + $0x44] sm:$0xf]
        %v1314 = vld [vmem:[%s3 + $0x48] sm:$0xf]
        %v1315 = vld [vmem:[%s3 + $0x4c] sm:$0xf]
        %v1316 = vld [vmem:[%s3 + $0x50] sm:$0xf]
        %v1317 = vld [vmem:[%s3 + $0x54] sm:$0xf]
        %v1318 = vld [vmem:[%s3 + $0x58] sm:$0xf]
        %v1319 = vld [vmem:[%s3 + $0x5c] sm:$0xf]
        %v1320 = vld [vmem:[%s3 + $0x60] sm:$0xf]
        %v1321 = vld [vmem:[%s3 + $0x64] sm:$0xf]
        %v1322 = vld [vmem:[%s3 + $0x68] sm:$0xf]
        %v1323 = vld [vmem:[%s3 + $0x6c] sm:$0xf]
        %v1324 = vld [vmem:[%s3 + $0x70] sm:$0xf]
        %v1325 = vld [vmem:[%s3 + $0x74] sm:$0xf]
        %v1326 = vld [vmem:[%s3 + $0x78] sm:$0xf]
        %v1327 = vld [vmem:[%s3 + $0x7c] sm:$0xf]
        %v1328 = vld [vmem:[%s4] sm:$0x1]
        %v1330 = vperm.slane %v1328, 0
        %v1364 = vunpack.c.l.b16 %v1296
        %v1365 = vunpack.c.l.b16 %v1297
        %v1366 = vunpack.c.l.b16 %v1298
        %v1367 = vunpack.c.l.b16 %v1299
        %v1368 = vunpack.c.l.b16 %v1300
        %v1369 = vunpack.c.l.b16 %v1301
        %v1370 = vunpack.c.l.b16 %v1302
        %v1371 = vunpack.c.l.b16 %v1303
        %v1372 = vunpack.c.l.b16 %v1304
        %v1373 = vunpack.c.l.b16 %v1305
        %v1374 = vunpack.c.l.b16 %v1306
        %v1375 = vunpack.c.l.b16 %v1307
        %v1376 = vunpack.c.l.b16 %v1308
        %v1377 = vunpack.c.l.b16 %v1309
        %v1378 = vunpack.c.l.b16 %v1310
        %v1379 = vunpack.c.l.b16 %v1311
        %v1380 = vunpack.c.l.b16 %v1312
        %v1381 = vunpack.c.l.b16 %v1313
        %v1382 = vunpack.c.l.b16 %v1314
        %v1383 = vunpack.c.l.b16 %v1315
        %v1384 = vunpack.c.l.b16 %v1316
        %v1385 = vunpack.c.l.b16 %v1317
        %v1386 = vunpack.c.l.b16 %v1318
        %v1387 = vunpack.c.l.b16 %v1319
        %v1388 = vunpack.c.l.b16 %v1320
        %v1389 = vunpack.c.l.b16 %v1321
        %v1390 = vunpack.c.l.b16 %v1322
        %v1391 = vunpack.c.l.b16 %v1323
        %v1392 = vunpack.c.l.b16 %v1324
        %v1393 = vunpack.c.l.b16 %v1325
        %v1394 = vunpack.c.l.b16 %v1326
        %v1395 = vunpack.c.l.b16 %v1327
        %v1396 = vpack.c.b16 %v1365, %v1364
        %v1397 = vpack.c.b16 %v1367, %v1366
        %v1398 = vpack.c.b16 %v1369, %v1368
        %v1399 = vpack.c.b16 %v1371, %v1370
        %v1400 = vpack.c.b16 %v1373, %v1372
        %v1401 = vpack.c.b16 %v1375, %v1374
        %v1402 = vpack.c.b16 %v1377, %v1376
        %v1403 = vpack.c.b16 %v1379, %v1378
        %v1404 = vpack.c.b16 %v1381, %v1380
        %v1405 = vpack.c.b16 %v1383, %v1382
        %v1406 = vpack.c.b16 %v1385, %v1384
        %v1407 = vpack.c.b16 %v1387, %v1386
        %v1408 = vpack.c.b16 %v1389, %v1388
        %v1409 = vpack.c.b16 %v1391, %v1390
        %v1410 = vpack.c.b16 %v1393, %v1392
        %v1411 = vpack.c.b16 %v1395, %v1394
        %1428 = vmatpush.bf16.msra.mxu0 %v1403
        %1429 = vmatpush.bf16.msra.mxu0 %v1402
        %1430 = vmatpush.bf16.msra.mxu0 %v1401
        %1431 = vmatpush.bf16.msra.mxu0 %v1400
        %1432 = vmatpush.bf16.msra.mxu0 %v1399
        %1433 = vmatpush.bf16.msra.mxu0 %v1398
        %1434 = vmatpush.bf16.msra.mxu0 %v1397
        %1435 = vmatpush.bf16.msra.mxu0 %v1396
        %1436 = vmatmul.bf16.gmra.mxu0 %v1294
        %v1437 = vpop.f32.mrf.mxu0
        %v1438 = vadd.f32 %v1330, %v1437
        %v1439 = vpop.f32.mrf.mxu0
        %1440 = vdwg.mxu0
        %1441 = vmatpush.bf16.msra.mxu0 %v1411
        %1442 = vmatpush.bf16.msra.mxu0 %v1410
        %1443 = vmatpush.bf16.msra.mxu0 %v1409
        %1444 = vmatpush.bf16.msra.mxu0 %v1408
        %1445 = vmatpush.bf16.msra.mxu0 %v1407
        %1446 = vmatpush.bf16.msra.mxu0 %v1406
        %1447 = vmatpush.bf16.msra.mxu0 %v1405
        %1448 = vmatpush.bf16.msra.mxu0 %v1404
        %1449 = vmatmul.bf16.gmra.mxu0 %v1295
        %v1450 = vpop.f32.mrf.mxu0
        %v1451 = vadd.f32 %v1438, %v1450
        %v1452 = vpop.f32.mrf.mxu0
        %1453 = vdwg.mxu0
        %v1454 = vmax.f32 %v1451, 0.0
        %v1455 = vpack.c.bf16 %v1454, %v1454
        %v1456 = vld [vmem:[%s5] sm:$0xf]
        %v1457 = vld [vmem:[%s5 + $0x4] sm:$0xf]
        %v1458 = vld [vmem:[%s5 + $0x8] sm:$0xf]
        %v1459 = vld [vmem:[%s5 + $0xc] sm:$0xf]
        %v1460 = vld [vmem:[%s5 + $0x10] sm:$0xf]
        %v1461 = vld [vmem:[%s5 + $0x14] sm:$0xf]
        %v1462 = vld [vmem:[%s5 + $0x18] sm:$0xf]
        %v1463 = vld [vmem:[%s5 + $0x1c] sm:$0xf]
        %v1464 = vld [vmem:[%s6] sm:$0x1]
        %v1466 = vperm.slane %v1464, 0
        %v1476 = vunpack.c.l.b16 %v1456
        %v1477 = vunpack.c.l.b16 %v1457
        %v1478 = vunpack.c.l.b16 %v1458
        %v1479 = vunpack.c.l.b16 %v1459
        %v1480 = vunpack.c.l.b16 %v1460
        %v1481 = vunpack.c.l.b16 %v1461
        %v1482 = vunpack.c.l.b16 %v1462
        %v1483 = vunpack.c.l.b16 %v1463
        %v1484 = vpack.c.b16 %v1477, %v1476
        %v1485 = vpack.c.b16 %v1479, %v1478
        %v1486 = vpack.c.b16 %v1481, %v1480
        %v1487 = vpack.c.b16 %v1483, %v1482
        %vm1492 = vcmask 523264
        %v1494 = vsel %vm1492, %v1455, 0
        %1496 = vmatpush.bf16.msra.mxu0 0
        %1497 = vmatpush.bf16.msra.mxu0 0
        %1498 = vmatpush.bf16.msra.mxu0 0
        %1499 = vmatpush.bf16.msra.mxu0 0
        %1500 = vmatpush.bf16.msra.mxu0 %v1487
        %1501 = vmatpush.bf16.msra.mxu0 %v1486
        %1502 = vmatpush.bf16.msra.mxu0 %v1485
        %1503 = vmatpush.bf16.msra.mxu0 %v1484
        %1504 = vmatmul.bf16.gmra.mxu0 %v1494
        %v1505 = vpop.f32.mrf.mxu0
        %v1506 = vadd.f32 %v1466, %v1505
        %v1507 = vpop.f32.mrf.mxu0
        %1508 = vdwg.mxu0
        %1509 = vst [vmem:[%s271] sm:$0xff] %v1506
        %s1510 = sand.u32 %s181, 1
        %s1511 = scalar_lea.sflag [#allocation3], %s1510
        %s1512 = sand.u32 %s181, 1
        %s1513 = smul.addr %s1512, 8
        %s1514 = scalar_lea.vmem [#allocation2], %s1513
        // Predicated region
        $region49: #{att_feat_extractor_forward.1} parent=47 // pred_check
          %p1515 = pneg %p191
        $region50: #{att_feat_extractor_forward.1} parent=47 // pred_check_branch
          %1517 = sbr.rel (%p1515) target = $region52
        $region51: #{att_feat_extractor_forward.1} parent=47 // pred_region
          %1519 = vsyncadd %s1511, 0
          %s1520 = smul.addr %s21, 8
          %s1521 = scalar_lea.hbm %s7, %s1520
          %s1523 = sshll.u32 %s1514, 4
          %s1524 = int_to_ptr.vmem [resolvable:$true] %s1523
          %s1525 = sshll.u32 %s1521, 4
          %s1526 = int_to_ptr.hbm [resolvable:$true] %s1525
          %1528 = dma.vmem_to_hbm [thread:$0]  %s1524, 128, %s1526, %s1511
        $region52: #{att_feat_extractor_forward.1} parent=47 // pred_fallthru
          _
      $region48: #{att_feat_extractor_forward.1} parent=5 // pred_fallthru
        _
      %p1529 = scmp.le.s32.totalorder 2, %s16
      // Predicated region
      $region53: #{att_feat_extractor_forward.1} parent=5 // pred_check
        %p1530 = pneg %p1529
      $region54: #{att_feat_extractor_forward.1} parent=5 // pred_check_branch
        %1532 = sbr.rel (%p1530) target = $region56
      $region55: #{att_feat_extractor_forward.1} parent=5 // pred_region
        %s1533 = ssub.s32 %s16, 2
        // Predicated region
        $region57: #{att_feat_extractor_forward.1} parent=55 // pred_check
          %p1534 = pneg %p197
        $region58: #{att_feat_extractor_forward.1} parent=55 // pred_check_branch
          %1536 = sbr.rel (%p1534) target = $region60
        $region59: #{att_feat_extractor_forward.1} parent=55 // pred_region
          %s1537 = sand.u32 %s182, 1
          %s1538 = scalar_lea.sflag [#allocation3], %s1537
          %s1539 = sand.u32 %s182, 1
          %s1540 = smul.addr %s1539, 8
          %s1541 = scalar_lea.vmem [#allocation2], %s1540
          %1543 = dma.done %s1538, 128
        $region60: #{att_feat_extractor_forward.1} parent=55 // pred_fallthru
          _
      $region56: #{att_feat_extractor_forward.1} parent=5 // pred_fallthru
        _
    $region6: #{att_feat_extractor_forward.1} parent=1 // loop_footer
      %s20 = sadd.s32 1, %s16
    $region7: #{att_feat_extractor_forward.1} parent=1 // loop_footer_branch
      %15 = sbr.rel target = $region3
    $region8: #{att_feat_extractor_forward.1} parent=1 // loop_exit
      _
    %1544 = vsyncpa [#allocation3], 1
    %s1545 = scalar_lea.sflag [#allocation3], 1
    %1546 = vsyncpa %s1545, 1

</llo_original>
